<compile_context>
chip_gen: v6e
topology: v6e:2x2x1
jax: 0.10.0
libtpu: 0.0.40
codegen_flags: <defaults>
</compile_context>

<pallas_src>
import jax
import jax.numpy as jnp
from jax import lax
from jax.experimental import pallas as pl
from jax.experimental.pallas import tpu as pltpu

HIDDEN = 32           # hidden_size
NUM_LABELS = 4        # num_labels (>2 -> cross-entropy path in the PyTorch module)
BATCH = 8
N_LEARNER_BLOCKS = 3  # learner_hidden_units
LN_EPS = 1e-5
NEG = -1e30           # pad value for the final-bias columns >= NUM_LABELS


# ---------------------------------------------------------------------------
# Kernel bodies
# ---------------------------------------------------------------------------
def _learner_mlp(x_ref, w_ref, v_ref):
    """Exact trace of LearnerNN.forward (n_hidden=3, dropout = identity).

    w_ref: (N+1, H, H) bf16 weight slab; last entry is the final Linear,
           zero-padded on output columns >= NUM_LABELS.
    v_ref: (N+1, 3, B, H) f32 slab of [bias, gamma, beta] already broadcast
           over batch; last entry's bias row is the final bias with NEG pads.
    Returns padded logits (B, H) f32 (columns >= NUM_LABELS equal NEG).
    """
    h = x_ref[...]                                            # (B, H) f32
    for i in range(N_LEARNER_BLOCKS):                         # static unroll
        w = w_ref[i]                                          # (H, H) bf16
        z = jnp.dot(h.astype(jnp.bfloat16), w,
                    preferred_element_type=jnp.float32)       # MXU bf16 -> f32 acc
        z = z + v_ref[i, 0] + h                               # bias + residual (f32)
        mu = jnp.mean(z, axis=-1, keepdims=True)
        c = z - mu
        var = jnp.mean(c * c, axis=-1, keepdims=True)         # centered (two-pass) var
        z = c * lax.rsqrt(var + LN_EPS) * v_ref[i, 1] + v_ref[i, 2]
        h = jnp.maximum(z, 0.0)                               # ReLU
    wf = w_ref[N_LEARNER_BLOCKS]                              # (H, H) bf16, cols>=C zero
    logits = jnp.dot(h.astype(jnp.bfloat16), wf,
                     preferred_element_type=jnp.float32)
    return logits + v_ref[N_LEARNER_BLOCKS, 0]                # bias (+ NEG pads)


def learner_kernel(x_ref, w_ref, v_ref, logits_ref):
    """targets=None path: logits only."""
    logits_full = _learner_mlp(x_ref, w_ref, v_ref)           # (B, H)
    logits_ref[...] = logits_full[:, :NUM_LABELS]


def learner_loss_kernel(x_ref, w_ref, v_ref, tgt_ref, logits_ref, losses_ref):
    """Fused: learner MLP + mean cross-entropy + [loss, -loss] output."""
    logits_full = _learner_mlp(x_ref, w_ref, v_ref)           # (B, H), pads = NEG
    logits_ref[...] = logits_full[:, :NUM_LABELS]

    B, H = logits_full.shape
    m = jnp.max(logits_full, axis=-1, keepdims=True)                      # (B,1)
    lse = m + jnp.log(jnp.sum(jnp.exp(logits_full - m), axis=-1, keepdims=True))

    # Vectorized gather of logits[i, tgt[i]]: one compare + one reduce.
    col = lax.broadcasted_iota(jnp.int32, (B, H), 1)
    onehot = col == tgt_ref[...]                                          # (B,H) bool
    picked = jnp.sum(jnp.where(onehot, logits_full, 0.0),
                     axis=-1, keepdims=True)                              # (B,1)

    loss11 = jnp.sum(lse - picked, axis=0, keepdims=True) * (1.0 / B)     # (1,1)
    # pretrain=True -> adversary weights are all ones: learner_loss = loss,
    # adversary_loss = -loss.  Single store of [loss, -loss].
    signs = (1 - 2 * lax.broadcasted_iota(jnp.int32, (1, 2), 1)).astype(jnp.float32)
    losses_ref[...] = loss11 * signs


# ---------------------------------------------------------------------------
# Parameters: logical f32 params + one-time packing into two kernel slabs
# ---------------------------------------------------------------------------
def init_params(key, hidden, num_labels, n_blocks):
    kw, kb, kg, kbe, kf, kbf = jax.random.split(key, 6)
    return dict(
        wstack=0.1 * jax.random.normal(kw, (n_blocks, hidden, hidden), jnp.float32),
        b=0.1 * jax.random.normal(kb, (n_blocks, hidden), jnp.float32),
        gamma=1.0 + 0.1 * jax.random.normal(kg, (n_blocks, hidden), jnp.float32),
        beta=0.1 * jax.random.normal(kbe, (n_blocks, hidden), jnp.float32),
        wf=0.1 * jax.random.normal(kf, (hidden, num_labels), jnp.float32),
        bf=0.1 * jax.random.normal(kbf, (num_labels,), jnp.float32),
    )


def pack_params(p, batch):
    """Pack 14 tiny arrays into 2 slabs (done once, outside the kernel)."""
    H, C, n = HIDDEN, NUM_LABELS, N_LEARNER_BLOCKS
    # Weight slab: (n+1, H, H) bf16.  Final Linear zero-padded on output columns.
    wf_pad = jnp.zeros((H, H), jnp.float32).at[:, :C].set(p["wf"])
    w_slab = jnp.concatenate([p["wstack"], wf_pad[None]], axis=0).astype(jnp.bfloat16)

    # Vector slab: (n+1, 3, B, H) f32 — bias/gamma/beta pre-broadcast over batch.
    def bcast(v):
        return jnp.broadcast_to(v[None, :], (batch, H))

    rows = []
    for i in range(n):
        rows.append(jnp.stack([bcast(p["b"][i]), bcast(p["gamma"][i]),
                               bcast(p["beta"][i])]))
    bf_pad = jnp.full((H,), NEG, jnp.float32).at[:C].set(p["bf"])
    zeros = jnp.zeros((H,), jnp.float32)
    rows.append(jnp.stack([bcast(bf_pad), bcast(zeros), bcast(zeros)]))
    v_slab = jnp.stack(rows)                                  # (n+1, 3, B, H)
    return w_slab, v_slab


# ---------------------------------------------------------------------------
# Forward wrapper (matches ARL.forward output structure, pretrain=True)
# ---------------------------------------------------------------------------
def _cost(batch, with_loss):
    flops = 2 * batch * HIDDEN * HIDDEN * (N_LEARNER_BLOCKS + 1) + 12 * batch * HIDDEN
    transcendentals = batch * N_LEARNER_BLOCKS + (batch * (HIDDEN + 1) if with_loss else 0)
    bytes_accessed = (batch * HIDDEN * 4
                      + (N_LEARNER_BLOCKS + 1) * HIDDEN * HIDDEN * 2
                      + (N_LEARNER_BLOCKS + 1) * 3 * batch * HIDDEN * 4
                      + batch * NUM_LABELS * 4
                      + (batch * 4 + 8 if with_loss else 0))
    return pl.CostEstimate(flops=flops, transcendentals=transcendentals,
                           bytes_accessed=bytes_accessed)


def arl_forward(packed, features, targets=None):
    w_slab, v_slab = packed
    B = features.shape[0]
    vmem = pl.BlockSpec(memory_space=pltpu.MemorySpace.VMEM)

    if targets is None:
        logits = pl.pallas_call(
            learner_kernel,
            out_shape=jax.ShapeDtypeStruct((B, NUM_LABELS), jnp.float32),
            in_specs=[vmem] * 3,
            out_specs=vmem,
            cost_estimate=_cost(B, with_loss=False),
        )(features, w_slab, v_slab)
        return (logits,)

    tgt_col = targets.reshape(B, 1).astype(jnp.int32)
    logits, losses = pl.pallas_call(
        learner_loss_kernel,
        out_shape=(jax.ShapeDtypeStruct((B, NUM_LABELS), jnp.float32),
                   jax.ShapeDtypeStruct((1, 2), jnp.float32)),
        in_specs=[vmem] * 4,
        out_specs=(vmem, vmem),
        cost_estimate=_cost(B, with_loss=True),
    )(features, w_slab, v_slab, tgt_col)

    return (losses[0, 0], losses[0, 1], logits)


# ---------------------------------------------------------------------------
# Plain-JAX references for correctness check
# ---------------------------------------------------------------------------
def _reference_forward(p, features, targets, emulate_bf16):
    def maybe(x):
        return x.astype(jnp.bfloat16).astype(jnp.float32) if emulate_bf16 else x

    h = features
    for i in range(N_LEARNER_BLOCKS):
        z = jnp.dot(maybe(h), maybe(p["wstack"][i]),
                    preferred_element_type=jnp.float32) + p["b"][i]
        z = z + h
        mu = z.mean(-1, keepdims=True)
        c = z - mu
        var = (c * c).mean(-1, keepdims=True)
        z = c * lax.rsqrt(var + LN_EPS) * p["gamma"][i] + p["beta"][i]
        h = jnp.maximum(z, 0.0)
    logits = jnp.dot(maybe(h), maybe(p["wf"]),
                     preferred_element_type=jnp.float32) + p["bf"]
    lse = jax.scipy.special.logsumexp(logits, axis=-1)
    picked = jnp.take_along_axis(logits, targets.reshape(-1, 1), axis=-1)[:, 0]
    loss = jnp.mean(lse - picked)
    return loss, -loss, logits


if __name__ == "__main__":
    key = jax.random.PRNGKey(0)
    key, kx, kt, kp = jax.random.split(key, 4)
    features = jax.random.normal(kx, (BATCH, HIDDEN), jnp.float32)
    targets = jax.random.randint(kt, (BATCH,), 0, NUM_LABELS, jnp.int32)
    params = init_params(kp, HIDDEN, NUM_LABELS, N_LEARNER_BLOCKS)
    packed = pack_params(params, BATCH)

    # targets=None path: (logits,)
    (logits_only,) = arl_forward(packed, features, targets=None)
    jax.block_until_ready(logits_only)

    # targets path: (learner_loss, adversary_loss, logits) — one fused kernel
    learner_loss, adversary_loss, logits = arl_forward(packed, features, targets)
    jax.block_until_ready((learner_loss, adversary_loss, logits))

    # Tight check vs a reference that uses the same bf16 matmul operands.
    ll_bf, al_bf, lg_bf = _reference_forward(params, features, targets, emulate_bf16=True)
    assert jnp.allclose(logits_only, lg_bf, atol=2e-3, rtol=2e-3)
    assert jnp.allclose(logits, lg_bf, atol=2e-3, rtol=2e-3)
    assert jnp.allclose(learner_loss, ll_bf, atol=2e-3, rtol=2e-3)
    assert jnp.allclose(adversary_loss, al_bf, atol=2e-3, rtol=2e-3)

    # Looser check vs the pure-f32 PyTorch-equivalent reference (bf16 MXU inputs
    # introduce ~0.1-1% deviation, well inside this tolerance).
    ll_f, al_f, lg_f = _reference_forward(params, features, targets, emulate_bf16=False)
    assert jnp.allclose(logits, lg_f, atol=5e-2, rtol=5e-2)
    assert jnp.allclose(learner_loss, ll_f, atol=5e-2, rtol=5e-2)
    assert jnp.allclose(adversary_loss, al_f, atol=5e-2, rtol=5e-2)

    print("KERNEL_OK")
</pallas_src>

<mosaic_0001>
module attributes {stable_mosaic.version = 11 : i64} {
  func.func @learner_kernel(%arg0: memref<8x32xf32, #tpu.memory_space<vmem>>, %arg1: memref<4x32x32xbf16, #tpu.memory_space<vmem>>, %arg2: memref<4x3x8x32xf32, #tpu.memory_space<vmem>>, %arg3: memref<8x4xf32, #tpu.memory_space<vmem>>) attributes {dimension_semantics = [], scalar_prefetch = 0 : i64, scratch_operands = 0 : i64, tpu.core_type = #tpu.core_type<tc>} {
    %c0 = arith.constant 0 : index
    %c0_0 = arith.constant 0 : index
    %0 = vector.load %arg0[%c0, %c0_0] : memref<8x32xf32, #tpu.memory_space<vmem>>, vector<8x32xf32>
    %c0_1 = arith.constant 0 : index
    %c0_2 = arith.constant 0 : index
    %c0_3 = arith.constant 0 : index
    %1 = vector.load %arg1[%c0_1, %c0_2, %c0_3] : memref<4x32x32xbf16, #tpu.memory_space<vmem>>, vector<1x32x32xbf16>
    %2 = vector.shape_cast %1 : vector<1x32x32xbf16> to vector<32x32xbf16>
    %3 = arith.truncf %0 : vector<8x32xf32> to vector<8x32xbf16>
    %cst = arith.constant dense<0.000000e+00> : vector<8x32xf32>
    %4 = tpu.matmul %3, %2, %cst {dimension_numbers = #tpu.dot_dimension_numbers<[1], [0], [0], [1], [0, 0, 1, 1], [], []>} : vector<8x32xbf16>, vector<32x32xbf16>, vector<8x32xf32> -> vector<8x32xf32>
    %c0_4 = arith.constant 0 : index
    %c0_5 = arith.constant 0 : index
    %c0_6 = arith.constant 0 : index
    %c0_7 = arith.constant 0 : index
    %5 = vector.load %arg2[%c0_4, %c0_5, %c0_6, %c0_7] : memref<4x3x8x32xf32, #tpu.memory_space<vmem>>, vector<1x1x8x32xf32>
    %6 = vector.shape_cast %5 : vector<1x1x8x32xf32> to vector<8x32xf32>
    %7 = arith.addf %4, %6 : vector<8x32xf32>
    %8 = arith.addf %7, %0 : vector<8x32xf32>
    %cst_8 = arith.constant dense<0.000000e+00> : vector<8xf32>
    %9 = vector.multi_reduction <add>, %8, %cst_8 [1] : vector<8x32xf32> to vector<8xf32>
    %10 = vector.shape_cast %9 : vector<8xf32> to vector<8x1xf32>
    %cst_9 = arith.constant 3.200000e+01 : f32
    %11 = vector.broadcast %cst_9 : f32 to vector<8x1xf32>
    %12 = arith.divf %10, %11 : vector<8x1xf32>
    %13 = vector.broadcast %12 : vector<8x1xf32> to vector<8x32xf32>
    %14 = arith.subf %8, %13 : vector<8x32xf32>
    %15 = arith.mulf %14, %14 : vector<8x32xf32>
    %cst_10 = arith.constant dense<0.000000e+00> : vector<8xf32>
    %16 = vector.multi_reduction <add>, %15, %cst_10 [1] : vector<8x32xf32> to vector<8xf32>
    %17 = vector.shape_cast %16 : vector<8xf32> to vector<8x1xf32>
    %cst_11 = arith.constant 3.200000e+01 : f32
    %18 = vector.broadcast %cst_11 : f32 to vector<8x1xf32>
    %19 = arith.divf %17, %18 : vector<8x1xf32>
    %cst_12 = arith.constant 9.99999974E-6 : f32
    %20 = vector.broadcast %cst_12 : f32 to vector<8x1xf32>
    %21 = arith.addf %19, %20 : vector<8x1xf32>
    %22 = math.rsqrt %21 : vector<8x1xf32>
    %23 = vector.broadcast %22 : vector<8x1xf32> to vector<8x32xf32>
    %24 = arith.mulf %14, %23 : vector<8x32xf32>
    %c0_13 = arith.constant 0 : index
    %c1 = arith.constant 1 : index
    %c0_14 = arith.constant 0 : index
    %c0_15 = arith.constant 0 : index
    %25 = vector.load %arg2[%c0_13, %c1, %c0_14, %c0_15] : memref<4x3x8x32xf32, #tpu.memory_space<vmem>>, vector<1x1x8x32xf32>
    %26 = vector.shape_cast %25 : vector<1x1x8x32xf32> to vector<8x32xf32>
    %27 = arith.mulf %24, %26 : vector<8x32xf32>
    %c0_16 = arith.constant 0 : index
    %c2 = arith.constant 2 : index
    %c0_17 = arith.constant 0 : index
    %c0_18 = arith.constant 0 : index
    %28 = vector.load %arg2[%c0_16, %c2, %c0_17, %c0_18] : memref<4x3x8x32xf32, #tpu.memory_space<vmem>>, vector<1x1x8x32xf32>
    %29 = vector.shape_cast %28 : vector<1x1x8x32xf32> to vector<8x32xf32>
    %30 = arith.addf %27, %29 : vector<8x32xf32>
    %cst_19 = arith.constant 0.000000e+00 : f32
    %31 = vector.broadcast %cst_19 : f32 to vector<8x32xf32>
    %32 = arith.maximumf %30, %31 : vector<8x32xf32>
    %c1_20 = arith.constant 1 : index
    %c0_21 = arith.constant 0 : index
    %c0_22 = arith.constant 0 : index
    %33 = vector.load %arg1[%c1_20, %c0_21, %c0_22] : memref<4x32x32xbf16, #tpu.memory_space<vmem>>, vector<1x32x32xbf16>
    %34 = vector.shape_cast %33 : vector<1x32x32xbf16> to vector<32x32xbf16>
    %35 = arith.truncf %32 : vector<8x32xf32> to vector<8x32xbf16>
    %cst_23 = arith.constant dense<0.000000e+00> : vector<8x32xf32>
    %36 = tpu.matmul %35, %34, %cst_23 {dimension_numbers = #tpu.dot_dimension_numbers<[1], [0], [0], [1], [0, 0, 1, 1], [], []>} : vector<8x32xbf16>, vector<32x32xbf16>, vector<8x32xf32> -> vector<8x32xf32>
    %c1_24 = arith.constant 1 : index
    %c0_25 = arith.constant 0 : index
    %c0_26 = arith.constant 0 : index
    %c0_27 = arith.constant 0 : index
    %37 = vector.load %arg2[%c1_24, %c0_25, %c0_26, %c0_27] : memref<4x3x8x32xf32, #tpu.memory_space<vmem>>, vector<1x1x8x32xf32>
    %38 = vector.shape_cast %37 : vector<1x1x8x32xf32> to vector<8x32xf32>
    %39 = arith.addf %36, %38 : vector<8x32xf32>
    %40 = arith.addf %39, %32 : vector<8x32xf32>
    %cst_28 = arith.constant dense<0.000000e+00> : vector<8xf32>
    %41 = vector.multi_reduction <add>, %40, %cst_28 [1] : vector<8x32xf32> to vector<8xf32>
    %42 = vector.shape_cast %41 : vector<8xf32> to vector<8x1xf32>
    %cst_29 = arith.constant 3.200000e+01 : f32
    %43 = vector.broadcast %cst_29 : f32 to vector<8x1xf32>
    %44 = arith.divf %42, %43 : vector<8x1xf32>
    %45 = vector.broadcast %44 : vector<8x1xf32> to vector<8x32xf32>
    %46 = arith.subf %40, %45 : vector<8x32xf32>
    %47 = arith.mulf %46, %46 : vector<8x32xf32>
    %cst_30 = arith.constant dense<0.000000e+00> : vector<8xf32>
    %48 = vector.multi_reduction <add>, %47, %cst_30 [1] : vector<8x32xf32> to vector<8xf32>
    %49 = vector.shape_cast %48 : vector<8xf32> to vector<8x1xf32>
    %cst_31 = arith.constant 3.200000e+01 : f32
    %50 = vector.broadcast %cst_31 : f32 to vector<8x1xf32>
    %51 = arith.divf %49, %50 : vector<8x1xf32>
    %cst_32 = arith.constant 9.99999974E-6 : f32
    %52 = vector.broadcast %cst_32 : f32 to vector<8x1xf32>
    %53 = arith.addf %51, %52 : vector<8x1xf32>
    %54 = math.rsqrt %53 : vector<8x1xf32>
    %55 = vector.broadcast %54 : vector<8x1xf32> to vector<8x32xf32>
    %56 = arith.mulf %46, %55 : vector<8x32xf32>
    %c1_33 = arith.constant 1 : index
    %c1_34 = arith.constant 1 : index
    %c0_35 = arith.constant 0 : index
    %c0_36 = arith.constant 0 : index
    %57 = vector.load %arg2[%c1_33, %c1_34, %c0_35, %c0_36] : memref<4x3x8x32xf32, #tpu.memory_space<vmem>>, vector<1x1x8x32xf32>
    %58 = vector.shape_cast %57 : vector<1x1x8x32xf32> to vector<8x32xf32>
    %59 = arith.mulf %56, %58 : vector<8x32xf32>
    %c1_37 = arith.constant 1 : index
    %c2_38 = arith.constant 2 : index
    %c0_39 = arith.constant 0 : index
    %c0_40 = arith.constant 0 : index
    %60 = vector.load %arg2[%c1_37, %c2_38, %c0_39, %c0_40] : memref<4x3x8x32xf32, #tpu.memory_space<vmem>>, vector<1x1x8x32xf32>
    %61 = vector.shape_cast %60 : vector<1x1x8x32xf32> to vector<8x32xf32>
    %62 = arith.addf %59, %61 : vector<8x32xf32>
    %cst_41 = arith.constant 0.000000e+00 : f32
    %63 = vector.broadcast %cst_41 : f32 to vector<8x32xf32>
    %64 = arith.maximumf %62, %63 : vector<8x32xf32>
    %c2_42 = arith.constant 2 : index
    %c0_43 = arith.constant 0 : index
    %c0_44 = arith.constant 0 : index
    %65 = vector.load %arg1[%c2_42, %c0_43, %c0_44] : memref<4x32x32xbf16, #tpu.memory_space<vmem>>, vector<1x32x32xbf16>
    %66 = vector.shape_cast %65 : vector<1x32x32xbf16> to vector<32x32xbf16>
    %67 = arith.truncf %64 : vector<8x32xf32> to vector<8x32xbf16>
    %cst_45 = arith.constant dense<0.000000e+00> : vector<8x32xf32>
    %68 = tpu.matmul %67, %66, %cst_45 {dimension_numbers = #tpu.dot_dimension_numbers<[1], [0], [0], [1], [0, 0, 1, 1], [], []>} : vector<8x32xbf16>, vector<32x32xbf16>, vector<8x32xf32> -> vector<8x32xf32>
    %c2_46 = arith.constant 2 : index
    %c0_47 = arith.constant 0 : index
    %c0_48 = arith.constant 0 : index
    %c0_49 = arith.constant 0 : index
    %69 = vector.load %arg2[%c2_46, %c0_47, %c0_48, %c0_49] : memref<4x3x8x32xf32, #tpu.memory_space<vmem>>, vector<1x1x8x32xf32>
    %70 = vector.shape_cast %69 : vector<1x1x8x32xf32> to vector<8x32xf32>
    %71 = arith.addf %68, %70 : vector<8x32xf32>
    %72 = arith.addf %71, %64 : vector<8x32xf32>
    %cst_50 = arith.constant dense<0.000000e+00> : vector<8xf32>
    %73 = vector.multi_reduction <add>, %72, %cst_50 [1] : vector<8x32xf32> to vector<8xf32>
    %74 = vector.shape_cast %73 : vector<8xf32> to vector<8x1xf32>
    %cst_51 = arith.constant 3.200000e+01 : f32
    %75 = vector.broadcast %cst_51 : f32 to vector<8x1xf32>
    %76 = arith.divf %74, %75 : vector<8x1xf32>
    %77 = vector.broadcast %76 : vector<8x1xf32> to vector<8x32xf32>
    %78 = arith.subf %72, %77 : vector<8x32xf32>
    %79 = arith.mulf %78, %78 : vector<8x32xf32>
    %cst_52 = arith.constant dense<0.000000e+00> : vector<8xf32>
    %80 = vector.multi_reduction <add>, %79, %cst_52 [1] : vector<8x32xf32> to vector<8xf32>
    %81 = vector.shape_cast %80 : vector<8xf32> to vector<8x1xf32>
    %cst_53 = arith.constant 3.200000e+01 : f32
    %82 = vector.broadcast %cst_53 : f32 to vector<8x1xf32>
    %83 = arith.divf %81, %82 : vector<8x1xf32>
    %cst_54 = arith.constant 9.99999974E-6 : f32
    %84 = vector.broadcast %cst_54 : f32 to vector<8x1xf32>
    %85 = arith.addf %83, %84 : vector<8x1xf32>
    %86 = math.rsqrt %85 : vector<8x1xf32>
    %87 = vector.broadcast %86 : vector<8x1xf32> to vector<8x32xf32>
    %88 = arith.mulf %78, %87 : vector<8x32xf32>
    %c2_55 = arith.constant 2 : index
    %c1_56 = arith.constant 1 : index
    %c0_57 = arith.constant 0 : index
    %c0_58 = arith.constant 0 : index
    %89 = vector.load %arg2[%c2_55, %c1_56, %c0_57, %c0_58] : memref<4x3x8x32xf32, #tpu.memory_space<vmem>>, vector<1x1x8x32xf32>
    %90 = vector.shape_cast %89 : vector<1x1x8x32xf32> to vector<8x32xf32>
    %91 = arith.mulf %88, %90 : vector<8x32xf32>
    %c2_59 = arith.constant 2 : index
    %c2_60 = arith.constant 2 : index
    %c0_61 = arith.constant 0 : index
    %c0_62 = arith.constant 0 : index
    %92 = vector.load %arg2[%c2_59, %c2_60, %c0_61, %c0_62] : memref<4x3x8x32xf32, #tpu.memory_space<vmem>>, vector<1x1x8x32xf32>
    %93 = vector.shape_cast %92 : vector<1x1x8x32xf32> to vector<8x32xf32>
    %94 = arith.addf %91, %93 : vector<8x32xf32>
    %cst_63 = arith.constant 0.000000e+00 : f32
    %95 = vector.broadcast %cst_63 : f32 to vector<8x32xf32>
    %96 = arith.maximumf %94, %95 : vector<8x32xf32>
    %c3 = arith.constant 3 : index
    %c0_64 = arith.constant 0 : index
    %c0_65 = arith.constant 0 : index
    %97 = vector.load %arg1[%c3, %c0_64, %c0_65] : memref<4x32x32xbf16, #tpu.memory_space<vmem>>, vector<1x32x32xbf16>
    %98 = vector.shape_cast %97 : vector<1x32x32xbf16> to vector<32x32xbf16>
    %99 = arith.truncf %96 : vector<8x32xf32> to vector<8x32xbf16>
    %cst_66 = arith.constant dense<0.000000e+00> : vector<8x32xf32>
    %100 = tpu.matmul %99, %98, %cst_66 {dimension_numbers = #tpu.dot_dimension_numbers<[1], [0], [0], [1], [0, 0, 1, 1], [], []>} : vector<8x32xbf16>, vector<32x32xbf16>, vector<8x32xf32> -> vector<8x32xf32>
    %c3_67 = arith.constant 3 : index
    %c0_68 = arith.constant 0 : index
    %c0_69 = arith.constant 0 : index
    %c0_70 = arith.constant 0 : index
    %101 = vector.load %arg2[%c3_67, %c0_68, %c0_69, %c0_70] : memref<4x3x8x32xf32, #tpu.memory_space<vmem>>, vector<1x1x8x32xf32>
    %102 = vector.shape_cast %101 : vector<1x1x8x32xf32> to vector<8x32xf32>
    %103 = arith.addf %100, %102 : vector<8x32xf32>
    %104 = vector.extract_strided_slice %103 {offsets = [0, 0], sizes = [8, 4], strides = [1, 1]} : vector<8x32xf32> to vector<8x4xf32>
    %c0_71 = arith.constant 0 : index
    %c0_72 = arith.constant 0 : index
    %105 = vector.load %arg3[%c0_71, %c0_72] : memref<8x4xf32, #tpu.memory_space<vmem>>, vector<8x4xf32>
    tpu.vector_store %arg3[%c0_71, %c0_72], %104 {strides = array<i32>} : memref<8x4xf32, #tpu.memory_space<vmem>>, vector<8x4xf32>,
    return
  }
}

</mosaic_0001>

<llo_original>
// kernel: tpu_custom_call.1
$region0: #{tpu_custom_call.1}
  #allocation0 [shape = 'u32[]', space=smem, size = 0x4, offset = 0x4, fixed_abs, tag = 'smem constant byte address 0x4 - core index']
  #allocation1 [shape = 'u32[144,128]{1,0:T(1,128)}', space=vmem, size = 0x12000, scoped, tag = 'internal scratch']
  %s0 = inlined_call_operand.hbm [shape: f32[8,32], index: 0, kind: input, shape index: {}]
  %s1 = inlined_call_operand.hbm [shape: bf16[4,32,32], index: 1, kind: input, shape index: {}]
  %s2 = inlined_call_operand.hbm [shape: f32[4,3,8,32], index: 2, kind: input, shape index: {}]
  %s3 = inlined_call_operand.vmem [shape: f32[8,4], index: 3, kind: output, shape index: {}]
  %s4 = sld [smem:[#allocation0]]
  $region34: #{tpu_custom_call.1} parent=0
    _
  %s6 = ssub.s32 1, %s4
  %s7 = scalar_select 0, %s6, %s4
  $region1: #{tpu_custom_call.1} parent=0
    #allocation2 [shape = 'u8[4096]{0}', space=vmem, size = 0x1000, scoped, tag = 'input window, operand 0, single buffered']
    #allocation3 [shape = 's32[1]{0}', space=sflag, size = 0x4, scoped, tag = 'scoped memory for tpu_custom_call.1']
    #allocation4 [shape = 'u8[32768]{0}', space=vmem, size = 0x8000, scoped, tag = 'input window, operand 1, single buffered']
    #allocation5 [shape = 's32[1]{0}', space=sflag, size = 0x4, scoped, tag = 'scoped memory for tpu_custom_call.1']
    #allocation6 [shape = 'u8[49152]{0}', space=vmem, size = 0xc000, scoped, tag = 'input window, operand 2, single buffered']
    %8 = vsyncpa [#allocation3], 0
    %9 = vsyncpa [#allocation5], 0
    // Predicated region
    $region2: #{tpu_custom_call.1} parent=1 // pred_check
      _
    $region3: #{tpu_custom_call.1} parent=1 // pred_check_branch
      %11 = sbr.rel (0) target = $region5
    $region4: #{tpu_custom_call.1} parent=1 // pred_region
      %s13 = ssub.s32 128, 128
      %14 = vsyncadd [#allocation3], %s13
      %s16 = sshll.u32 [#allocation2], 4
      %s17 = int_to_ptr.vmem [resolvable:$true] %s16
      %19 = dma.hbm_to_vmem [thread:$0]  %s0, 128, %s17, [#allocation3]
    $region5: #{tpu_custom_call.1} parent=1 // pred_fallthru
      _
    // Predicated region
    $region6: #{tpu_custom_call.1} parent=1 // pred_check
      _
    $region7: #{tpu_custom_call.1} parent=1 // pred_check_branch
      %21 = sbr.rel (0) target = $region9
    $region8: #{tpu_custom_call.1} parent=1 // pred_region
      %s23 = ssub.s32 1024, 1024
      %24 = vsyncadd [#allocation5], %s23
      %s25 = sshll.u32 [#allocation4], 4
      %s26 = int_to_ptr.vmem [resolvable:$true] %s25
      %31 = dma.hbm_to_vmem [thread:$0]  %s1, 1024, %s26, [#allocation5], 64, 64, 4
    $region9: #{tpu_custom_call.1} parent=1 // pred_fallthru
      _
    // Predicated region
    $region10: #{tpu_custom_call.1} parent=1 // pred_check
      _
    $region11: #{tpu_custom_call.1} parent=1 // pred_check_branch
      %33 = sbr.rel (0) target = $region13
    $region12: #{tpu_custom_call.1} parent=1 // pred_region
      %s35 = ssub.s32 1536, 1536
      %36 = vsyncadd [#allocation5], %s35
      %s37 = sshll.u32 [#allocation6], 4
      %s38 = int_to_ptr.vmem [resolvable:$true] %s37
      %43 = dma.hbm_to_vmem [thread:$0]  %s2, 1536, %s38, [#allocation5], 128, 128, 8
    $region13: #{tpu_custom_call.1} parent=1 // pred_fallthru
      _
    // Predicated region
    $region14: #{tpu_custom_call.1} parent=1 // pred_check
      _
    $region15: #{tpu_custom_call.1} parent=1 // pred_check_branch
      %45 = sbr.rel (0) target = $region17
    $region16: #{tpu_custom_call.1} parent=1 // pred_region
      %46 = dma.done [#allocation3], 128
    $region17: #{tpu_custom_call.1} parent=1 // pred_fallthru
      _
    // Predicated region
    $region18: #{tpu_custom_call.1} parent=1 // pred_check
      _
    $region19: #{tpu_custom_call.1} parent=1 // pred_check_branch
      %48 = sbr.rel (0) target = $region21
    $region20: #{tpu_custom_call.1} parent=1 // pred_region
      %49 = dma.done [#allocation5], 1024
    $region21: #{tpu_custom_call.1} parent=1 // pred_fallthru
      _
    // Predicated region
    $region22: #{tpu_custom_call.1} parent=1 // pred_check
      _
    $region23: #{tpu_custom_call.1} parent=1 // pred_check_branch
      %51 = sbr.rel (0) target = $region25
    $region24: #{tpu_custom_call.1} parent=1 // pred_region
      %52 = dma.done [#allocation5], 1536
    $region25: #{tpu_custom_call.1} parent=1 // pred_fallthru
      _
    %v54 = vld [vmem:[#allocation2] sm:$0xff]
    %v55 = vld [vmem:[#allocation4] sm:$0xf]
    %v56 = vld [vmem:[#allocation4 + $0x4] sm:$0xf]
    %v57 = vld [vmem:[#allocation4 + $0x8] sm:$0xf]
    %v58 = vld [vmem:[#allocation4 + $0xc] sm:$0xf]
    %v59 = vpack.c.bf16 %v54, %v54
    %v60 = vld [vmem:[#allocation6] sm:$0xff]
    %v65 = vunpack.c.l.b16 %v55
    %v66 = vunpack.c.l.b16 %v56
    %v67 = vunpack.c.l.b16 %v57
    %v68 = vunpack.c.l.b16 %v58
    %v69 = vpack.c.b16 %v66, %v65
    %v70 = vpack.c.b16 %v68, %v67
    %vm73 = vcmask 261120
    %v75 = vsel %vm73, %v59, 0
    %77 = vmatprep.subr.bf16.mxu0 0
    %78 = vmatpush1.bf16.msra.mxu0 0
    %79 = vmatprep.subr.bf16.mxu0 0
    %80 = vmatpush1.bf16.msra.mxu0 0
    %81 = vmatprep.subr.bf16.mxu0 0
    %82 = vmatpush1.bf16.msra.mxu0 0
    %83 = vmatprep.subr.bf16.mxu0 0
    %84 = vmatpush1.bf16.msra.mxu0 0
    %85 = vmatprep.subr.bf16.mxu0 0
    %86 = vmatpush1.bf16.msra.mxu0 0
    %87 = vmatprep.subr.bf16.mxu0 0
    %88 = vmatpush1.bf16.msra.mxu0 0
    %89 = vmatprep.subr.bf16.mxu0 0
    %90 = vmatpush1.bf16.msra.mxu0 %v70
    %91 = vmatprep.subr.bf16.mxu0 0
    %92 = vmatpush1.bf16.msra.mxu0 %v69
    %93 = vmatprep.subr.bf16.mxu0 0
    %94 = vmatpush2.bf16.msra.mxu0 0
    %95 = vmatprep.subr.bf16.mxu0 0
    %96 = vmatpush2.bf16.msra.mxu0 0
    %97 = vmatprep.subr.bf16.mxu0 0
    %98 = vmatpush2.bf16.msra.mxu0 0
    %99 = vmatprep.subr.bf16.mxu0 0
    %100 = vmatpush2.bf16.msra.mxu0 0
    %101 = vmatprep.subr.bf16.mxu0 0
    %102 = vmatpush2.bf16.msra.mxu0 0
    %103 = vmatprep.subr.bf16.mxu0 0
    %104 = vmatpush2.bf16.msra.mxu0 0
    %105 = vmatprep.subr.bf16.mxu0 0
    %106 = vmatpush2.bf16.msra.mxu0 0
    %107 = vmatprep.subr.bf16.mxu0 0
    %108 = vmatpush2.bf16.msra.mxu0 0
    %109 = vmatprep.mubr.bf16.mxu0 0
    %110 = vmatmul.mubr.bf16.gmra.mxu0 %v75
    %v111 = vpop.f32.mrf.mxu0
    %v112 = vadd.f32 %v60, %v111
    %v113 = vpop.f32.mrf.mxu0
    %v114 = vpop.f32.mrf.mxu0
    %v115 = vpop.f32.mrf.mxu0
    %116 = vdwg.mxu0
    %v117 = vadd.f32 %v112, %v54
    %v118 = vsel %vm73, %v117, 0.0
    %119 = vadd.xlane.f32.xlu0 %v118
    %v120 = vpop.xlane.xlu0 %119
    %v121 = vrcp.pop 32.0
    %v122 = vmul.f32 %v120, %v121
    %v123 = vsub.f32 %v117, %v122
    %v124 = vmul.f32 %v123, %v123
    %v125 = vsel %vm73, %v124, 0.0
    %126 = vadd.xlane.f32.xlu0 %v125
    %v127 = vpop.xlane.xlu0 %126
    %v128 = vmul.f32 %v127, %v121
    %v129 = vadd.f32 %v128, 1e-05
    %v130 = vrsqrt.pop %v129
    %v131 = vmul.f32 %v123, %v130
    %s132 = scalar_lea.vmem [#allocation6], 8
    %v133 = vld [vmem:[%s132] sm:$0xff]
    %v134 = vmul.f32 %v131, %v133
    %s135 = scalar_lea.vmem [#allocation6], 16
    %v136 = vld [vmem:[%s135] sm:$0xff]
    %v137 = vadd.f32 %v134, %v136
    %v138 = vmax.f32 %v137, 0.0
    %s139 = scalar_lea.vmem [#allocation4], 16
    %v140 = vld [vmem:[%s139] sm:$0xf]
    %v141 = vld [vmem:[%s139 + $0x4] sm:$0xf]
    %v142 = vld [vmem:[%s139 + $0x8] sm:$0xf]
    %v143 = vld [vmem:[%s139 + $0xc] sm:$0xf]
    %v144 = vpack.c.bf16 %v138, %v138
    %s145 = scalar_lea.vmem [#allocation6], 24
    %v146 = vld [vmem:[%s145] sm:$0xff]
    %v151 = vunpack.c.l.b16 %v140
    %v152 = vunpack.c.l.b16 %v141
    %v153 = vunpack.c.l.b16 %v142
    %v154 = vunpack.c.l.b16 %v143
    %v155 = vpack.c.b16 %v152, %v151
    %v156 = vpack.c.b16 %v154, %v153
    %v160 = vsel %vm73, %v144, 0
    %162 = vmatprep.subr.bf16.mxu0 0
    %163 = vmatpush1.bf16.msra.mxu0 0
    %164 = vmatprep.subr.bf16.mxu0 0
    %165 = vmatpush1.bf16.msra.mxu0 0
    %166 = vmatprep.subr.bf16.mxu0 0
    %167 = vmatpush1.bf16.msra.mxu0 0
    %168 = vmatprep.subr.bf16.mxu0 0
    %169 = vmatpush1.bf16.msra.mxu0 0
    %170 = vmatprep.subr.bf16.mxu0 0
    %171 = vmatpush1.bf16.msra.mxu0 0
    %172 = vmatprep.subr.bf16.mxu0 0
    %173 = vmatpush1.bf16.msra.mxu0 0
    %174 = vmatprep.subr.bf16.mxu0 0
    %175 = vmatpush1.bf16.msra.mxu0 %v156
    %176 = vmatprep.subr.bf16.mxu0 0
    %177 = vmatpush1.bf16.msra.mxu0 %v155
    %178 = vmatprep.subr.bf16.mxu0 0
    %179 = vmatpush2.bf16.msra.mxu0 0
    %180 = vmatprep.subr.bf16.mxu0 0
    %181 = vmatpush2.bf16.msra.mxu0 0
    %182 = vmatprep.subr.bf16.mxu0 0
    %183 = vmatpush2.bf16.msra.mxu0 0
    %184 = vmatprep.subr.bf16.mxu0 0
    %185 = vmatpush2.bf16.msra.mxu0 0
    %186 = vmatprep.subr.bf16.mxu0 0
    %187 = vmatpush2.bf16.msra.mxu0 0
    %188 = vmatprep.subr.bf16.mxu0 0
    %189 = vmatpush2.bf16.msra.mxu0 0
    %190 = vmatprep.subr.bf16.mxu0 0
    %191 = vmatpush2.bf16.msra.mxu0 0
    %192 = vmatprep.subr.bf16.mxu0 0
    %193 = vmatpush2.bf16.msra.mxu0 0
    %194 = vmatprep.mubr.bf16.mxu0 0
    %195 = vmatmul.mubr.bf16.gmra.mxu0 %v160
    %v196 = vpop.f32.mrf.mxu0
    %v197 = vadd.f32 %v146, %v196
    %v198 = vpop.f32.mrf.mxu0
    %v199 = vpop.f32.mrf.mxu0
    %v200 = vpop.f32.mrf.mxu0
    %201 = vdwg.mxu0
    %v202 = vadd.f32 %v197, %v138
    %v203 = vsel %vm73, %v202, 0.0
    %204 = vadd.xlane.f32.xlu0 %v203
    %v205 = vpop.xlane.xlu0 %204
    %v206 = vmul.f32 %v205, %v121
    %v207 = vsub.f32 %v202, %v206
    %v208 = vmul.f32 %v207, %v207
    %v209 = vsel %vm73, %v208, 0.0
    %210 = vadd.xlane.f32.xlu0 %v209
    %v211 = vpop.xlane.xlu0 %210
    %v212 = vmul.f32 %v211, %v121
    %v213 = vadd.f32 %v212, 1e-05
    %v214 = vrsqrt.pop %v213
    %v215 = vmul.f32 %v207, %v214
    %s216 = scalar_lea.vmem [#allocation6], 32
    %v217 = vld [vmem:[%s216] sm:$0xff]
    %v218 = vmul.f32 %v215, %v217
    %s219 = scalar_lea.vmem [#allocation6], 40
    %v220 = vld [vmem:[%s219] sm:$0xff]
    %v221 = vadd.f32 %v218, %v220
    %v222 = vmax.f32 %v221, 0.0
    %s223 = scalar_lea.vmem [#allocation4], 32
    %v224 = vld [vmem:[%s223] sm:$0xf]
    %v225 = vld [vmem:[%s223 + $0x4] sm:$0xf]
    %v226 = vld [vmem:[%s223 + $0x8] sm:$0xf]
    %v227 = vld [vmem:[%s223 + $0xc] sm:$0xf]
    %v228 = vpack.c.bf16 %v222, %v222
    %s229 = scalar_lea.vmem [#allocation6], 48
    %v230 = vld [vmem:[%s229] sm:$0xff]
    %v235 = vunpack.c.l.b16 %v224
    %v236 = vunpack.c.l.b16 %v225
    %v237 = vunpack.c.l.b16 %v226
    %v238 = vunpack.c.l.b16 %v227
    %v239 = vpack.c.b16 %v236, %v235
    %v240 = vpack.c.b16 %v238, %v237
    %v244 = vsel %vm73, %v228, 0
    %246 = vmatprep.subr.bf16.mxu0 0
    %247 = vmatpush1.bf16.msra.mxu0 0
    %248 = vmatprep.subr.bf16.mxu0 0
    %249 = vmatpush1.bf16.msra.mxu0 0
    %250 = vmatprep.subr.bf16.mxu0 0
    %251 = vmatpush1.bf16.msra.mxu0 0
    %252 = vmatprep.subr.bf16.mxu0 0
    %253 = vmatpush1.bf16.msra.mxu0 0
    %254 = vmatprep.subr.bf16.mxu0 0
    %255 = vmatpush1.bf16.msra.mxu0 0
    %256 = vmatprep.subr.bf16.mxu0 0
    %257 = vmatpush1.bf16.msra.mxu0 0
    %258 = vmatprep.subr.bf16.mxu0 0
    %259 = vmatpush1.bf16.msra.mxu0 %v240
    %260 = vmatprep.subr.bf16.mxu0 0
    %261 = vmatpush1.bf16.msra.mxu0 %v239
    %262 = vmatprep.subr.bf16.mxu0 0
    %263 = vmatpush2.bf16.msra.mxu0 0
    %264 = vmatprep.subr.bf16.mxu0 0
    %265 = vmatpush2.bf16.msra.mxu0 0
    %266 = vmatprep.subr.bf16.mxu0 0
    %267 = vmatpush2.bf16.msra.mxu0 0
    %268 = vmatprep.subr.bf16.mxu0 0
    %269 = vmatpush2.bf16.msra.mxu0 0
    %270 = vmatprep.subr.bf16.mxu0 0
    %271 = vmatpush2.bf16.msra.mxu0 0
    %272 = vmatprep.subr.bf16.mxu0 0
    %273 = vmatpush2.bf16.msra.mxu0 0
    %274 = vmatprep.subr.bf16.mxu0 0
    %275 = vmatpush2.bf16.msra.mxu0 0
    %276 = vmatprep.subr.bf16.mxu0 0
    %277 = vmatpush2.bf16.msra.mxu0 0
    %278 = vmatprep.mubr.bf16.mxu0 0
    %279 = vmatmul.mubr.bf16.gmra.mxu0 %v244
    %v280 = vpop.f32.mrf.mxu0
    %v281 = vadd.f32 %v230, %v280
    %v282 = vpop.f32.mrf.mxu0
    %v283 = vpop.f32.mrf.mxu0
    %v284 = vpop.f32.mrf.mxu0
    %285 = vdwg.mxu0
    %v286 = vadd.f32 %v281, %v222
    %v287 = vsel %vm73, %v286, 0.0
    %288 = vadd.xlane.f32.xlu0 %v287
    %v289 = vpop.xlane.xlu0 %288
    %v290 = vmul.f32 %v289, %v121
    %v291 = vsub.f32 %v286, %v290
    %v292 = vmul.f32 %v291, %v291
    %v293 = vsel %vm73, %v292, 0.0
    %294 = vadd.xlane.f32.xlu0 %v293
    %v295 = vpop.xlane.xlu0 %294
    %v296 = vmul.f32 %v295, %v121
    %v297 = vadd.f32 %v296, 1e-05
    %v298 = vrsqrt.pop %v297
    %v299 = vmul.f32 %v291, %v298
    %s300 = scalar_lea.vmem [#allocation6], 56
    %v301 = vld [vmem:[%s300] sm:$0xff]
    %v302 = vmul.f32 %v299, %v301
    %s303 = scalar_lea.vmem [#allocation6], 64
    %v304 = vld [vmem:[%s303] sm:$0xff]
    %v305 = vadd.f32 %v302, %v304
    %v306 = vmax.f32 %v305, 0.0
    %s307 = scalar_lea.vmem [#allocation4], 48
    %v308 = vld [vmem:[%s307] sm:$0xf]
    %v309 = vld [vmem:[%s307 + $0x4] sm:$0xf]
    %v310 = vld [vmem:[%s307 + $0x8] sm:$0xf]
    %v311 = vld [vmem:[%s307 + $0xc] sm:$0xf]
    %v312 = vpack.c.bf16 %v306, %v306
    %s313 = scalar_lea.vmem [#allocation6], 72
    %v314 = vld [vmem:[%s313] sm:$0xff]
    %v319 = vunpack.c.l.b16 %v308
    %v320 = vunpack.c.l.b16 %v309
    %v321 = vunpack.c.l.b16 %v310
    %v322 = vunpack.c.l.b16 %v311
    %v323 = vpack.c.b16 %v320, %v319
    %v324 = vpack.c.b16 %v322, %v321
    %v328 = vsel %vm73, %v312, 0
    %330 = vmatprep.subr.bf16.mxu0 0
    %331 = vmatpush1.bf16.msra.mxu0 0
    %332 = vmatprep.subr.bf16.mxu0 0
    %333 = vmatpush1.bf16.msra.mxu0 0
    %334 = vmatprep.subr.bf16.mxu0 0
    %335 = vmatpush1.bf16.msra.mxu0 0
    %336 = vmatprep.subr.bf16.mxu0 0
    %337 = vmatpush1.bf16.msra.mxu0 0
    %338 = vmatprep.subr.bf16.mxu0 0
    %339 = vmatpush1.bf16.msra.mxu0 0
    %340 = vmatprep.subr.bf16.mxu0 0
    %341 = vmatpush1.bf16.msra.mxu0 0
    %342 = vmatprep.subr.bf16.mxu0 0
    %343 = vmatpush1.bf16.msra.mxu0 %v324
    %344 = vmatprep.subr.bf16.mxu0 0
    %345 = vmatpush1.bf16.msra.mxu0 %v323
    %346 = vmatprep.subr.bf16.mxu0 0
    %347 = vmatpush2.bf16.msra.mxu0 0
    %348 = vmatprep.subr.bf16.mxu0 0
    %349 = vmatpush2.bf16.msra.mxu0 0
    %350 = vmatprep.subr.bf16.mxu0 0
    %351 = vmatpush2.bf16.msra.mxu0 0
    %352 = vmatprep.subr.bf16.mxu0 0
    %353 = vmatpush2.bf16.msra.mxu0 0
    %354 = vmatprep.subr.bf16.mxu0 0
    %355 = vmatpush2.bf16.msra.mxu0 0
    %356 = vmatprep.subr.bf16.mxu0 0
    %357 = vmatpush2.bf16.msra.mxu0 0
    %358 = vmatprep.subr.bf16.mxu0 0
    %359 = vmatpush2.bf16.msra.mxu0 0
    %360 = vmatprep.subr.bf16.mxu0 0
    %361 = vmatpush2.bf16.msra.mxu0 0
    %362 = vmatprep.mubr.bf16.mxu0 0
    %363 = vmatmul.mubr.bf16.gmra.mxu0 %v328
    %v364 = vpop.f32.mrf.mxu0
    %v365 = vadd.f32 %v314, %v364
    %v366 = vpop.f32.mrf.mxu0
    %v367 = vpop.f32.mrf.mxu0
    %v368 = vpop.f32.mrf.mxu0
    %369 = vdwg.mxu0
    %vm370 = vcmask 31744
    %371 = vst.msk [vmem:[%s3] sm:$0xff] %vm370, %v365
    // Predicated region
    $region26: #{tpu_custom_call.1} parent=1 // pred_check
      _
    $region27: #{tpu_custom_call.1} parent=1 // pred_check_branch
      %373 = sbr.rel (0) target = $region29
    $region28: #{tpu_custom_call.1} parent=1 // pred_region
      _
    $region29: #{tpu_custom_call.1} parent=1 // pred_fallthru
      _
    // Predicated region
    $region30: #{tpu_custom_call.1} parent=1 // pred_check
      _
    $region31: #{tpu_custom_call.1} parent=1 // pred_check_branch
      %375 = sbr.rel (0) target = $region33
    $region32: #{tpu_custom_call.1} parent=1 // pred_region
      _
    $region33: #{tpu_custom_call.1} parent=1 // pred_fallthru
      _
    %376 = vsyncpa [#allocation3], 1
    %377 = vsyncpa [#allocation5], 1

</llo_original>
